<compile_context>
chip_gen: v7x
topology: tpu7x:2x2x1
jax: 0.10.0
libtpu: 0.0.40
codegen_flags: <defaults>
</compile_context>

<pallas_src>
import functools

import jax
import jax.numpy as jnp
from jax.experimental import pallas as pl


# ----------------------------- Pallas kernel --------------------------------


def _wam_fused_kernel(xaug_ref, masks_ref, ew1a_ref, ew2t_ref, eb2_ref,
                      dw1t_ref, db1_ref, dw2t_ref, db2_ref,
                      imgs_w_ref, comb_ref, preds_ref,
                      *, si, sw, n_wm, cin, bhw):
    """Grid-less fused Wam forward.

    Layout: everything is (rows, B*HW) with B*HW on the 128-lane axis.
      xaug  : (cin + B, B*HW)   image channels + per-batch indicator rows
      ew1a  : (n_wm, hidden, cin + B)  first-layer weight with msg bias folded
    Per watermark (static unrolled loop):
      h        = relu(W1a[wm] @ xaug)                 (MXU, bf16 -> f32 acc)
      delta    = W2^T @ h + b2                        (MXU, bf16 -> f32 acc)
      imgs_w   = si*x + sw*delta
      combined = combined*(1-mask) + imgs_w*mask
    Epilogue: detector = two MXU matmuls on `combined`.
    """
    f32 = jnp.float32
    bf16 = jnp.bfloat16

    xaug_f32 = xaug_ref[...]                          # (cin + B, BHW)
    x = xaug_f32[:cin, :]                             # (cin, BHW) original image
    xaug = xaug_f32.astype(bf16)

    ew2t = ew2t_ref[...].astype(bf16)                 # (cin, hidden)
    eb2 = jnp.broadcast_to(eb2_ref[...], (cin, bhw))  # hoisted lane-broadcast

    combined = x
    imgs_w = x
    for wm in range(n_wm):                            # static, fully unrolled
        w1a = ew1a_ref[wm].astype(bf16)               # (hidden, cin + B)
        h = jnp.maximum(
            jnp.dot(w1a, xaug, preferred_element_type=f32), 0.0)
        delta = jnp.dot(ew2t, h.astype(bf16),
                        preferred_element_type=f32) + eb2
        imgs_w = si * x + sw * delta
        mask = masks_ref[wm]                          # (1, BHW), bcast over cin
        combined = combined * (1.0 - mask) + imgs_w * mask

    imgs_w_ref[...] = imgs_w                          # store last wm only
    comb_ref[...] = combined

    # ---- detector epilogue on the composited image ----
    hidden = db1_ref.shape[0]
    cout = db2_ref.shape[0]
    db1 = jnp.broadcast_to(db1_ref[...], (hidden, bhw))
    db2 = jnp.broadcast_to(db2_ref[...], (cout, bhw))
    hd = jnp.maximum(
        jnp.dot(dw1t_ref[...].astype(bf16), combined.astype(bf16),
                preferred_element_type=f32) + db1, 0.0)
    preds_ref[...] = jnp.dot(dw2t_ref[...].astype(bf16), hd.astype(bf16),
                             preferred_element_type=f32) + db2


# ------------------------------ wrappers -------------------------------------


@functools.partial(jax.jit,
                   static_argnames=("scaling_i", "scaling_w", "nbits"))
def _wam_forward_arrays(imgs, masks, params, msg_key,
                        scaling_i, scaling_w, nbits):
    B, C, H, W = imgs.shape
    n_wm = masks.shape[1]
    HW = H * W
    BHW = B * HW
    hidden = params["emb_w1t"].shape[0]
    cout = params["det_w2t"].shape[0]

    # channels-first with batch packed into lanes: (C, B*HW),
    # batch-contiguous 256-lane segments (HW = 256 -> 2 full vregs per batch)
    imgs_cl = jnp.transpose(imgs.astype(jnp.float32).reshape(B, C, HW),
                            (1, 0, 2)).reshape(C, BHW)
    # batch indicator rows: row b is 1 on lanes [b*HW, (b+1)*HW)
    ind = jnp.repeat(jnp.eye(B, dtype=jnp.float32), HW, axis=1)    # (B, BHW)
    x_aug = jnp.concatenate([imgs_cl, ind], axis=0)                # (C+B, BHW)

    masks_cl = jnp.transpose(masks.astype(jnp.float32).reshape(B, n_wm, HW),
                             (1, 0, 2)).reshape(n_wm, 1, BHW)

    # vectorized message generation: one RNG op for all watermarks / batches
    msgs_all = jax.random.bernoulli(msg_key, 0.5,
                                    (n_wm, B, nbits)).astype(jnp.float32)

    # message path hoisted to XLA and folded into the first-layer weight:
    # ew1a[wm] = [ emb_w1t (hidden, C) | msg_bias[wm]^T (hidden, B) ]
    msg_bias = (jnp.einsum("wbn,nh->wbh", msgs_all, params["emb_wm"])
                + params["emb_b1"])                                # (n_wm,B,hid)
    ew1a = jnp.concatenate(
        [jnp.broadcast_to(params["emb_w1t"], (n_wm, hidden, C)),
         jnp.transpose(msg_bias, (0, 2, 1))], axis=2)              # (n_wm,hid,C+B)

    kernel = functools.partial(_wam_fused_kernel,
                               si=float(scaling_i), sw=float(scaling_w),
                               n_wm=n_wm, cin=C, bhw=BHW)

    out_shapes = (jax.ShapeDtypeStruct((C, BHW), jnp.float32),     # imgs_w
                  jax.ShapeDtypeStruct((C, BHW), jnp.float32),     # combined
                  jax.ShapeDtypeStruct((cout, BHW), jnp.float32))  # preds

    # grid=() : whole arrays are single VMEM blocks (total < 50 KiB), one
    # kernel invocation, no per-step pipeline overhead.
    imgs_w2, comb2, preds2 = pl.pallas_call(
        kernel, out_shape=out_shapes,
    )(x_aug, masks_cl, ew1a,
      params["emb_w2t"], params["emb_b2t"],
      params["det_w1t"], params["det_b1t"],
      params["det_w2t"], params["det_b2t"])

    def unpack(a, c):
        return jnp.transpose(a.reshape(c, B, HW), (1, 0, 2)).reshape(B, c, H, W)

    return {
        "msgs": jnp.transpose(msgs_all, (1, 0, 2)),       # (B, n_wm, nbits)
        "masks": masks.astype(bool),                      # (B, n_wm, H, W)
        "imgs_w": unpack(imgs_w2, C),
        "imgs_aug": unpack(comb2, C),
        "preds": unpack(preds2, cout),
    }


def wam_forward(imgs, masks, params, msg_key, *,
                scaling_i=1.0, scaling_w=0.3, nbits=8):
    """
    Wam.forward with roll_probability=0 (roll=False) and attenuation=None.
    imgs:  (B, C, H, W) float32, H == W == img_size_extractor
    masks: (B, n_wm, H, W) {0,1} float32
    """
    # TODO(synk): bilinear/nearest Resize, roll branch, JND attenuation and
    # augmenter.post_augment are identity at these shapes/settings and are
    # omitted.
    out = dict(_wam_forward_arrays(imgs, masks, params, msg_key,
                                   scaling_i=scaling_i, scaling_w=scaling_w,
                                   nbits=nbits))
    out["selected_aug"] = "identity"
    return out


# ------------------------------ params / reference ---------------------------


def init_wam_params(key, c_img=3, hidden=32, nbits=8):
    ks = jax.random.split(key, 8)
    s = 0.1
    return {
        "emb_w1t": s * jax.random.normal(ks[0], (hidden, c_img), jnp.float32),
        "emb_wm": s * jax.random.normal(ks[1], (nbits, hidden), jnp.float32),
        "emb_b1": s * jax.random.normal(ks[2], (hidden,), jnp.float32),
        "emb_w2t": s * jax.random.normal(ks[3], (c_img, hidden), jnp.float32),
        "emb_b2t": s * jax.random.normal(ks[4], (c_img, 1), jnp.float32),
        "det_w1t": s * jax.random.normal(ks[5], (hidden, c_img), jnp.float32),
        "det_b1t": s * jax.random.normal(ks[6], (hidden, 1), jnp.float32),
        "det_w2t": s * jax.random.normal(ks[7], (1 + nbits, hidden),
                                         jnp.float32),
        "det_b2t": jnp.zeros((1 + nbits, 1), jnp.float32),
    }


def _wam_reference(imgs, masks, params, msgs_all, scaling_i, scaling_w):
    """Pure-JAX reference of the fused kernel (same math, incl. the bf16
    MXU-operand casts with f32 accumulation used in the kernel)."""
    bf16 = jnp.bfloat16
    f32 = jnp.float32
    B, C, H, W = imgs.shape
    n_wm = masks.shape[1]
    x = imgs.reshape(B, C, H * W).astype(f32)
    combined = x
    imgs_w = x
    for i in range(n_wm):
        msgs = msgs_all[i]                                       # (B, nbits)
        msg_bias = msgs @ params["emb_wm"] + params["emb_b1"]    # (B, hidden)
        h = (jnp.einsum("hc,bcx->bhx", params["emb_w1t"].astype(bf16),
                        x.astype(bf16), preferred_element_type=f32)
             + msg_bias.astype(bf16).astype(f32)[:, :, None])
        h = jnp.maximum(h, 0.0)
        delta = (jnp.einsum("ch,bhx->bcx", params["emb_w2t"].astype(bf16),
                            h.astype(bf16), preferred_element_type=f32)
                 + params["emb_b2t"][None])
        imgs_w = scaling_i * x + scaling_w * delta
        mask = masks[:, i].reshape(B, 1, H * W)
        combined = combined * (1.0 - mask) + imgs_w * mask
    hd = jnp.maximum(
        jnp.einsum("hc,bcx->bhx", params["det_w1t"].astype(bf16),
                   combined.astype(bf16), preferred_element_type=f32)
        + params["det_b1t"][None], 0.0)
    preds = (jnp.einsum("oh,bhx->box", params["det_w2t"].astype(bf16),
                        hd.astype(bf16), preferred_element_type=f32)
             + params["det_b2t"][None])
    return (imgs_w.reshape(B, C, H, W),
            combined.reshape(B, C, H, W),
            preds.reshape(B, -1, H, W))


# ------------------------------- main -----------------------------------------


if __name__ == "__main__":
    key = jax.random.PRNGKey(0)
    k_img, k_mask, k_param, k_msg = jax.random.split(key, 4)

    B, C, H, W = 2, 3, 16, 16
    n_wm, nbits, hidden = 2, 8, 32

    imgs = jax.random.uniform(k_img, (B, C, H, W), jnp.float32)
    masks = jax.random.bernoulli(k_mask, 0.5, (B, n_wm, H, W)).astype(
        jnp.float32)
    params = init_wam_params(k_param, c_img=C, hidden=hidden, nbits=nbits)

    out = wam_forward(imgs, masks, params, k_msg,
                      scaling_i=1.0, scaling_w=0.3, nbits=nbits)
    for v in out.values():
        if isinstance(v, jax.Array):
            jax.block_until_ready(v)

    assert out["preds"].shape == (B, 1 + nbits, H, W)
    assert out["imgs_w"].shape == (B, C, H, W)
    assert out["imgs_aug"].shape == (B, C, H, W)
    assert out["msgs"].shape == (B, n_wm, nbits)
    assert out["masks"].shape == (B, n_wm, H, W)

    # numerical check against a pure-JAX reference (same messages, same math)
    msgs_all = jnp.transpose(out["msgs"], (1, 0, 2))   # (n_wm, B, nbits)
    ref_imgs_w, ref_comb, ref_preds = _wam_reference(
        imgs, masks, params, msgs_all, 1.0, 0.3)
    assert jnp.allclose(out["imgs_w"], ref_imgs_w, atol=1e-3, rtol=1e-3)
    assert jnp.allclose(out["imgs_aug"], ref_comb, atol=1e-3, rtol=1e-3)
    assert jnp.allclose(out["preds"], ref_preds, atol=1e-3, rtol=1e-3)

    print("KERNEL_OK")
</pallas_src>

<mosaic_0001>
module attributes {stable_mosaic.version = 11 : i64} {
  func.func @_wam_fused_kernel(%arg0: memref<5x512xf32, #tpu.memory_space<vmem>>, %arg1: memref<2x1x512xf32, #tpu.memory_space<vmem>>, %arg2: memref<2x32x5xf32, #tpu.memory_space<vmem>>, %arg3: memref<3x32xf32, #tpu.memory_space<vmem>>, %arg4: memref<3x1xf32, #tpu.memory_space<vmem>>, %arg5: memref<32x3xf32, #tpu.memory_space<vmem>>, %arg6: memref<32x1xf32, #tpu.memory_space<vmem>>, %arg7: memref<9x32xf32, #tpu.memory_space<vmem>>, %arg8: memref<9x1xf32, #tpu.memory_space<vmem>>, %arg9: memref<3x512xf32, #tpu.memory_space<vmem>>, %arg10: memref<3x512xf32, #tpu.memory_space<vmem>>, %arg11: memref<9x512xf32, #tpu.memory_space<vmem>>) attributes {dimension_semantics = [], scalar_prefetch = 0 : i64, scratch_operands = 0 : i64, tpu.core_type = #tpu.core_type<tc>} {
    %c0 = arith.constant 0 : index
    %c0_0 = arith.constant 0 : index
    %0 = vector.load %arg0[%c0, %c0_0] : memref<5x512xf32, #tpu.memory_space<vmem>>, vector<5x512xf32>
    %1 = vector.extract_strided_slice %0 {offsets = [0, 0], sizes = [3, 512], strides = [1, 1]} : vector<5x512xf32> to vector<3x512xf32>
    %2 = arith.truncf %0 : vector<5x512xf32> to vector<5x512xbf16>
    %c0_1 = arith.constant 0 : index
    %c0_2 = arith.constant 0 : index
    %3 = vector.load %arg3[%c0_1, %c0_2] : memref<3x32xf32, #tpu.memory_space<vmem>>, vector<3x32xf32>
    %4 = arith.truncf %3 : vector<3x32xf32> to vector<3x32xbf16>
    %c0_3 = arith.constant 0 : index
    %c0_4 = arith.constant 0 : index
    %5 = vector.load %arg4[%c0_3, %c0_4] : memref<3x1xf32, #tpu.memory_space<vmem>>, vector<3x1xf32>
    %6 = vector.shape_cast %5 : vector<3x1xf32> to vector<3x1xf32>
    %7 = vector.broadcast %6 : vector<3x1xf32> to vector<3x512xf32>
    %c0_5 = arith.constant 0 : index
    %c0_6 = arith.constant 0 : index
    %c0_7 = arith.constant 0 : index
    %8 = vector.load %arg2[%c0_5, %c0_6, %c0_7] : memref<2x32x5xf32, #tpu.memory_space<vmem>>, vector<1x32x5xf32>
    %9 = vector.shape_cast %8 : vector<1x32x5xf32> to vector<32x5xf32>
    %10 = arith.truncf %9 : vector<32x5xf32> to vector<32x5xbf16>
    %cst = arith.constant dense<0.000000e+00> : vector<32x512xf32>
    %11 = tpu.matmul %10, %2, %cst {dimension_numbers = #tpu.dot_dimension_numbers<[1], [0], [0], [1], [0, 0, 1, 1], [], []>} : vector<32x5xbf16>, vector<5x512xbf16>, vector<32x512xf32> -> vector<32x512xf32>
    %cst_8 = arith.constant 0.000000e+00 : f32
    %12 = vector.broadcast %cst_8 : f32 to vector<32x512xf32>
    %13 = arith.maximumf %11, %12 : vector<32x512xf32>
    %14 = arith.truncf %13 : vector<32x512xf32> to vector<32x512xbf16>
    %cst_9 = arith.constant dense<0.000000e+00> : vector<3x512xf32>
    %15 = tpu.matmul %4, %14, %cst_9 {dimension_numbers = #tpu.dot_dimension_numbers<[1], [0], [0], [1], [0, 0, 1, 1], [], []>} : vector<3x32xbf16>, vector<32x512xbf16>, vector<3x512xf32> -> vector<3x512xf32>
    %16 = arith.addf %15, %7 : vector<3x512xf32>
    %cst_10 = arith.constant 1.000000e+00 : f32
    %17 = vector.broadcast %cst_10 : f32 to vector<3x512xf32>
    %18 = arith.mulf %17, %1 : vector<3x512xf32>
    %cst_11 = arith.constant 3.000000e-01 : f32
    %19 = vector.broadcast %cst_11 : f32 to vector<3x512xf32>
    %20 = arith.mulf %19, %16 : vector<3x512xf32>
    %21 = arith.addf %18, %20 : vector<3x512xf32>
    %c0_12 = arith.constant 0 : index
    %c0_13 = arith.constant 0 : index
    %c0_14 = arith.constant 0 : index
    %22 = vector.load %arg1[%c0_12, %c0_13, %c0_14] : memref<2x1x512xf32, #tpu.memory_space<vmem>>, vector<1x1x512xf32>
    %23 = vector.shape_cast %22 : vector<1x1x512xf32> to vector<1x512xf32>
    %cst_15 = arith.constant 1.000000e+00 : f32
    %24 = vector.broadcast %cst_15 : f32 to vector<1x512xf32>
    %25 = arith.subf %24, %23 : vector<1x512xf32>
    %26 = vector.broadcast %25 : vector<1x512xf32> to vector<3x512xf32>
    %27 = arith.mulf %1, %26 : vector<3x512xf32>
    %28 = vector.broadcast %23 : vector<1x512xf32> to vector<3x512xf32>
    %29 = arith.mulf %21, %28 : vector<3x512xf32>
    %30 = arith.addf %27, %29 : vector<3x512xf32>
    %c1 = arith.constant 1 : index
    %c0_16 = arith.constant 0 : index
    %c0_17 = arith.constant 0 : index
    %31 = vector.load %arg2[%c1, %c0_16, %c0_17] : memref<2x32x5xf32, #tpu.memory_space<vmem>>, vector<1x32x5xf32>
    %32 = vector.shape_cast %31 : vector<1x32x5xf32> to vector<32x5xf32>
    %33 = arith.truncf %32 : vector<32x5xf32> to vector<32x5xbf16>
    %cst_18 = arith.constant dense<0.000000e+00> : vector<32x512xf32>
    %34 = tpu.matmul %33, %2, %cst_18 {dimension_numbers = #tpu.dot_dimension_numbers<[1], [0], [0], [1], [0, 0, 1, 1], [], []>} : vector<32x5xbf16>, vector<5x512xbf16>, vector<32x512xf32> -> vector<32x512xf32>
    %cst_19 = arith.constant 0.000000e+00 : f32
    %35 = vector.broadcast %cst_19 : f32 to vector<32x512xf32>
    %36 = arith.maximumf %34, %35 : vector<32x512xf32>
    %37 = arith.truncf %36 : vector<32x512xf32> to vector<32x512xbf16>
    %cst_20 = arith.constant dense<0.000000e+00> : vector<3x512xf32>
    %38 = tpu.matmul %4, %37, %cst_20 {dimension_numbers = #tpu.dot_dimension_numbers<[1], [0], [0], [1], [0, 0, 1, 1], [], []>} : vector<3x32xbf16>, vector<32x512xbf16>, vector<3x512xf32> -> vector<3x512xf32>
    %39 = arith.addf %38, %7 : vector<3x512xf32>
    %cst_21 = arith.constant 1.000000e+00 : f32
    %40 = vector.broadcast %cst_21 : f32 to vector<3x512xf32>
    %41 = arith.mulf %40, %1 : vector<3x512xf32>
    %cst_22 = arith.constant 3.000000e-01 : f32
    %42 = vector.broadcast %cst_22 : f32 to vector<3x512xf32>
    %43 = arith.mulf %42, %39 : vector<3x512xf32>
    %44 = arith.addf %41, %43 : vector<3x512xf32>
    %c1_23 = arith.constant 1 : index
    %c0_24 = arith.constant 0 : index
    %c0_25 = arith.constant 0 : index
    %45 = vector.load %arg1[%c1_23, %c0_24, %c0_25] : memref<2x1x512xf32, #tpu.memory_space<vmem>>, vector<1x1x512xf32>
    %46 = vector.shape_cast %45 : vector<1x1x512xf32> to vector<1x512xf32>
    %cst_26 = arith.constant 1.000000e+00 : f32
    %47 = vector.broadcast %cst_26 : f32 to vector<1x512xf32>
    %48 = arith.subf %47, %46 : vector<1x512xf32>
    %49 = vector.broadcast %48 : vector<1x512xf32> to vector<3x512xf32>
    %50 = arith.mulf %30, %49 : vector<3x512xf32>
    %51 = vector.broadcast %46 : vector<1x512xf32> to vector<3x512xf32>
    %52 = arith.mulf %44, %51 : vector<3x512xf32>
    %53 = arith.addf %50, %52 : vector<3x512xf32>
    %c0_27 = arith.constant 0 : index
    %c0_28 = arith.constant 0 : index
    %54 = vector.load %arg9[%c0_27, %c0_28] : memref<3x512xf32, #tpu.memory_space<vmem>>, vector<3x512xf32>
    tpu.vector_store %arg9[%c0_27, %c0_28], %44 {strides = array<i32>} : memref<3x512xf32, #tpu.memory_space<vmem>>, vector<3x512xf32>,
    %c0_29 = arith.constant 0 : index
    %c0_30 = arith.constant 0 : index
    %55 = vector.load %arg10[%c0_29, %c0_30] : memref<3x512xf32, #tpu.memory_space<vmem>>, vector<3x512xf32>
    tpu.vector_store %arg10[%c0_29, %c0_30], %53 {strides = array<i32>} : memref<3x512xf32, #tpu.memory_space<vmem>>, vector<3x512xf32>,
    %c0_31 = arith.constant 0 : index
    %c0_32 = arith.constant 0 : index
    %56 = vector.load %arg6[%c0_31, %c0_32] : memref<32x1xf32, #tpu.memory_space<vmem>>, vector<32x1xf32>
    %57 = vector.shape_cast %56 : vector<32x1xf32> to vector<32x1xf32>
    %58 = vector.broadcast %57 : vector<32x1xf32> to vector<32x512xf32>
    %c0_33 = arith.constant 0 : index
    %c0_34 = arith.constant 0 : index
    %59 = vector.load %arg8[%c0_33, %c0_34] : memref<9x1xf32, #tpu.memory_space<vmem>>, vector<9x1xf32>
    %60 = vector.shape_cast %59 : vector<9x1xf32> to vector<9x1xf32>
    %61 = vector.broadcast %60 : vector<9x1xf32> to vector<9x512xf32>
    %c0_35 = arith.constant 0 : index
    %c0_36 = arith.constant 0 : index
    %62 = vector.load %arg5[%c0_35, %c0_36] : memref<32x3xf32, #tpu.memory_space<vmem>>, vector<32x3xf32>
    %63 = arith.truncf %62 : vector<32x3xf32> to vector<32x3xbf16>
    %64 = arith.truncf %53 : vector<3x512xf32> to vector<3x512xbf16>
    %cst_37 = arith.constant dense<0.000000e+00> : vector<32x512xf32>
    %65 = tpu.matmul %63, %64, %cst_37 {dimension_numbers = #tpu.dot_dimension_numbers<[1], [0], [0], [1], [0, 0, 1, 1], [], []>} : vector<32x3xbf16>, vector<3x512xbf16>, vector<32x512xf32> -> vector<32x512xf32>
    %66 = arith.addf %65, %58 : vector<32x512xf32>
    %cst_38 = arith.constant 0.000000e+00 : f32
    %67 = vector.broadcast %cst_38 : f32 to vector<32x512xf32>
    %68 = arith.maximumf %66, %67 : vector<32x512xf32>
    %c0_39 = arith.constant 0 : index
    %c0_40 = arith.constant 0 : index
    %69 = vector.load %arg7[%c0_39, %c0_40] : memref<9x32xf32, #tpu.memory_space<vmem>>, vector<9x32xf32>
    %70 = arith.truncf %69 : vector<9x32xf32> to vector<9x32xbf16>
    %71 = arith.truncf %68 : vector<32x512xf32> to vector<32x512xbf16>
    %cst_41 = arith.constant dense<0.000000e+00> : vector<9x512xf32>
    %72 = tpu.matmul %70, %71, %cst_41 {dimension_numbers = #tpu.dot_dimension_numbers<[1], [0], [0], [1], [0, 0, 1, 1], [], []>} : vector<9x32xbf16>, vector<32x512xbf16>, vector<9x512xf32> -> vector<9x512xf32>
    %73 = arith.addf %72, %61 : vector<9x512xf32>
    %c0_42 = arith.constant 0 : index
    %c0_43 = arith.constant 0 : index
    %74 = vector.load %arg11[%c0_42, %c0_43] : memref<9x512xf32, #tpu.memory_space<vmem>>, vector<9x512xf32>
    tpu.vector_store %arg11[%c0_42, %c0_43], %73 {strides = array<i32>} : memref<9x512xf32, #tpu.memory_space<vmem>>, vector<9x512xf32>,
    return
  }
}

</mosaic_0001>

<llo_original>
// kernel: _wam_forward_arrays.1
$region0: #{_wam_forward_arrays.1}
  #allocation0 [shape = 'u32[]', space=smem, size = 0x4, offset = 0x4, fixed_abs, tag = 'smem constant byte address 0x4 - core index']
  #allocation1 [shape = 'u32[144,128]{1,0:T(1,128)}', space=vmem, size = 0x12000, scoped, tag = 'internal scratch']
  %s0 = inlined_call_operand.vmem [shape: f32[5,512], index: 0, kind: input, shape index: {}]
  %s1 = inlined_call_operand.vmem [shape: f32[2,1,512], index: 1, kind: input, shape index: {}]
  %s2 = inlined_call_operand.vmem [shape: f32[2,32,5], index: 2, kind: input, shape index: {}]
  %s3 = inlined_call_operand.vmem [shape: f32[3,32], index: 3, kind: input, shape index: {}]
  %s4 = inlined_call_operand.vmem [shape: f32[3,1], index: 4, kind: input, shape index: {}]
  %s5 = inlined_call_operand.vmem [shape: f32[32,3], index: 5, kind: input, shape index: {}]
  %s6 = inlined_call_operand.vmem [shape: f32[32,1], index: 6, kind: input, shape index: {}]
  %s7 = inlined_call_operand.vmem [shape: f32[9,32], index: 7, kind: input, shape index: {}]
  %s8 = inlined_call_operand.vmem [shape: f32[9,1], index: 8, kind: input, shape index: {}]
  %s9 = inlined_call_operand.vmem [shape: f32[3,512], index: 9, kind: output, shape index: {0}]
  %s10 = inlined_call_operand.vmem [shape: f32[3,512], index: 10, kind: output, shape index: {1}]
  %s11 = inlined_call_operand.vmem [shape: f32[9,512], index: 11, kind: output, shape index: {2}]
  %12 = xla_tuple %s9, %s10, %s11
  %s13 = sld [smem:[#allocation0]]
  $region62: #{_wam_forward_arrays.1} parent=0
    _
  %s15 = ssub.s32 1, %s13
  %s16 = scalar_select 0, %s15, %s13
  // Predicated region
  $region2: #{_wam_forward_arrays.1} parent=0 // pred_check
    _
  $region3: #{_wam_forward_arrays.1} parent=0 // pred_check_branch
    %18 = sbr.rel (0) target = $region5
  $region4: #{_wam_forward_arrays.1} parent=0 // pred_region
    _
  $region5: #{_wam_forward_arrays.1} parent=0 // pred_fallthru
    _
  // Predicated region
  $region6: #{_wam_forward_arrays.1} parent=0 // pred_check
    _
  $region7: #{_wam_forward_arrays.1} parent=0 // pred_check_branch
    %20 = sbr.rel (0) target = $region9
  $region8: #{_wam_forward_arrays.1} parent=0 // pred_region
    _
  $region9: #{_wam_forward_arrays.1} parent=0 // pred_fallthru
    _
  // Predicated region
  $region10: #{_wam_forward_arrays.1} parent=0 // pred_check
    _
  $region11: #{_wam_forward_arrays.1} parent=0 // pred_check_branch
    %22 = sbr.rel (0) target = $region13
  $region12: #{_wam_forward_arrays.1} parent=0 // pred_region
    _
  $region13: #{_wam_forward_arrays.1} parent=0 // pred_fallthru
    _
  // Predicated region
  $region14: #{_wam_forward_arrays.1} parent=0 // pred_check
    _
  $region15: #{_wam_forward_arrays.1} parent=0 // pred_check_branch
    %24 = sbr.rel (0) target = $region17
  $region16: #{_wam_forward_arrays.1} parent=0 // pred_region
    _
  $region17: #{_wam_forward_arrays.1} parent=0 // pred_fallthru
    _
  // Predicated region
  $region18: #{_wam_forward_arrays.1} parent=0 // pred_check
    _
  $region19: #{_wam_forward_arrays.1} parent=0 // pred_check_branch
    %26 = sbr.rel (0) target = $region21
  $region20: #{_wam_forward_arrays.1} parent=0 // pred_region
    _
  $region21: #{_wam_forward_arrays.1} parent=0 // pred_fallthru
    _
  // Predicated region
  $region22: #{_wam_forward_arrays.1} parent=0 // pred_check
    _
  $region23: #{_wam_forward_arrays.1} parent=0 // pred_check_branch
    %28 = sbr.rel (0) target = $region25
  $region24: #{_wam_forward_arrays.1} parent=0 // pred_region
    _
  $region25: #{_wam_forward_arrays.1} parent=0 // pred_fallthru
    _
  // Predicated region
  $region26: #{_wam_forward_arrays.1} parent=0 // pred_check
    _
  $region27: #{_wam_forward_arrays.1} parent=0 // pred_check_branch
    %30 = sbr.rel (0) target = $region29
  $region28: #{_wam_forward_arrays.1} parent=0 // pred_region
    _
  $region29: #{_wam_forward_arrays.1} parent=0 // pred_fallthru
    _
  // Predicated region
  $region30: #{_wam_forward_arrays.1} parent=0 // pred_check
    _
  $region31: #{_wam_forward_arrays.1} parent=0 // pred_check_branch
    %32 = sbr.rel (0) target = $region33
  $region32: #{_wam_forward_arrays.1} parent=0 // pred_region
    _
  $region33: #{_wam_forward_arrays.1} parent=0 // pred_fallthru
    _
  // Predicated region
  $region34: #{_wam_forward_arrays.1} parent=0 // pred_check
    _
  $region35: #{_wam_forward_arrays.1} parent=0 // pred_check_branch
    %34 = sbr.rel (0) target = $region37
  $region36: #{_wam_forward_arrays.1} parent=0 // pred_region
    _
  $region37: #{_wam_forward_arrays.1} parent=0 // pred_fallthru
    _
  %v36 = vld [vmem:[%s0] sm:$0x1f]
  %v37 = vld [vmem:[%s0 + $0x8] sm:$0x1f]
  %v38 = vld [vmem:[%s0 + $0x10] sm:$0x1f]
  %v39 = vld [vmem:[%s0 + $0x18] sm:$0x1f]
  %v40 = vpack.c.bf16 %v36, %v36
  %v41 = vpack.c.bf16 %v37, %v37
  %v42 = vpack.c.bf16 %v38, %v38
  %v43 = vpack.c.bf16 %v39, %v39
  %v44 = vld [vmem:[%s3] sm:$0x7]
  %v45 = vpack.c.bf16 %v44, %v44
  %v46 = vld [vmem:[%s4] sm:$0x7]
  %48 = vset.pattern.permute.xlu0 0
  %49 = vperm.xlu0 %48, %v46
  %v50 = vpop.permute.xlu0 %49
  %v52 = vld [vmem:[%s2] sm:$0xff]
  %v53 = vld [vmem:[%s2 + $0x8] sm:$0xff]
  %v54 = vld [vmem:[%s2 + $0x10] sm:$0xff]
  %v55 = vld [vmem:[%s2 + $0x18] sm:$0xff]
  %v56 = vpack.c.bf16 %v53, %v52
  %v57 = vpack.c.bf16 %v55, %v54
  %vm58 = vcmask 39936
  %v60 = vsel %vm58, %v56, 0
  %v63 = vsel %vm58, %v57, 0
  %vm65 = vcmask 1041408
  %vm66 = vcmask 1042432
  %v67 = vsel %vm65, 4294967295, 65535
  %v68 = vsel %vm66, %v67, 0
  %v70 = vand.u32 %v40, %v68
  %v73 = vand.u32 %v41, %v68
  %v76 = vand.u32 %v42, %v68
  %v79 = vand.u32 %v43, %v68
  %81 = vmatprep.subr.bf16.mxu0 %v73
  %82 = vmatpush1.bf16.msra.mxu0 %v70
  %83 = vmatprep.subr.bf16.mxu0 0
  %84 = vmatpush1.bf16.msra.mxu0 0
  %85 = vmatprep.subr.bf16.mxu0 0
  %86 = vmatpush1.bf16.msra.mxu0 0
  %87 = vmatprep.subr.bf16.mxu0 0
  %88 = vmatpush1.bf16.msra.mxu0 0
  %89 = vmatprep.subr.bf16.mxu0 0
  %90 = vmatpush1.bf16.msra.mxu0 0
  %91 = vmatprep.subr.bf16.mxu0 0
  %92 = vmatpush1.bf16.msra.mxu0 0
  %93 = vmatprep.subr.bf16.mxu0 0
  %94 = vmatpush1.bf16.msra.mxu0 0
  %95 = vmatprep.subr.bf16.mxu0 0
  %96 = vmatpush1.bf16.msra.mxu0 0
  %97 = vmatprep.subr.bf16.mxu0 0
  %98 = vmatpush1.bf16.msra.mxu0 0
  %99 = vmatprep.subr.bf16.mxu0 0
  %100 = vmatpush1.bf16.msra.mxu0 0
  %101 = vmatprep.subr.bf16.mxu0 0
  %102 = vmatpush1.bf16.msra.mxu0 0
  %103 = vmatprep.subr.bf16.mxu0 0
  %104 = vmatpush1.bf16.msra.mxu0 0
  %105 = vmatprep.subr.bf16.mxu0 0
  %106 = vmatpush1.bf16.msra.mxu0 0
  %107 = vmatprep.subr.bf16.mxu0 0
  %108 = vmatpush1.bf16.msra.mxu0 0
  %109 = vmatprep.subr.bf16.mxu0 0
  %110 = vmatpush1.bf16.msra.mxu0 0
  %111 = vmatprep.subr.bf16.mxu0 0
  %112 = vmatpush1.bf16.msra.mxu0 0
  %113 = vmatprep.mubr.bf16.mxu0 0
  %114 = vmatmul.mubr.bf16.gmra.mrb[0].mxu0 %v60
  %v115 = vpop.f32.mrb[0].mxu0
  %v116 = vadd.f32 0.0, %v115
  %v117 = vpop.f32.mrb[0].mxu0
  %v118 = vadd.f32 0.0, %v117
  %v119 = vpop.f32.mrb[0].mxu0
  %v120 = vadd.f32 0.0, %v119
  %v121 = vpop.f32.mrb[0].mxu0
  %v122 = vadd.f32 0.0, %v121
  %123 = vmatprep.mubr.bf16.mxu0 0
  %124 = vmatmul.mubr.bf16.gmra.mrb[0].mxu0 %v63
  %v125 = vpop.f32.mrb[0].mxu0
  %v126 = vadd.f32 0.0, %v125
  %v127 = vpop.f32.mrb[0].mxu0
  %v128 = vadd.f32 0.0, %v127
  %v129 = vpop.f32.mrb[0].mxu0
  %v130 = vadd.f32 0.0, %v129
  %v131 = vpop.f32.mrb[0].mxu0
  %v132 = vadd.f32 0.0, %v131
  %133 = vdwg.mxu0
  %134 = vmatprep.subr.bf16.mxu0 %v79
  %135 = vmatpush1.bf16.msra.mxu0 %v76
  %136 = vmatprep.subr.bf16.mxu0 0
  %137 = vmatpush1.bf16.msra.mxu0 0
  %138 = vmatprep.subr.bf16.mxu0 0
  %139 = vmatpush1.bf16.msra.mxu0 0
  %140 = vmatprep.subr.bf16.mxu0 0
  %141 = vmatpush1.bf16.msra.mxu0 0
  %142 = vmatprep.subr.bf16.mxu0 0
  %143 = vmatpush1.bf16.msra.mxu0 0
  %144 = vmatprep.subr.bf16.mxu0 0
  %145 = vmatpush1.bf16.msra.mxu0 0
  %146 = vmatprep.subr.bf16.mxu0 0
  %147 = vmatpush1.bf16.msra.mxu0 0
  %148 = vmatprep.subr.bf16.mxu0 0
  %149 = vmatpush1.bf16.msra.mxu0 0
  %150 = vmatprep.subr.bf16.mxu0 0
  %151 = vmatpush1.bf16.msra.mxu0 0
  %152 = vmatprep.subr.bf16.mxu0 0
  %153 = vmatpush1.bf16.msra.mxu0 0
  %154 = vmatprep.subr.bf16.mxu0 0
  %155 = vmatpush1.bf16.msra.mxu0 0
  %156 = vmatprep.subr.bf16.mxu0 0
  %157 = vmatpush1.bf16.msra.mxu0 0
  %158 = vmatprep.subr.bf16.mxu0 0
  %159 = vmatpush1.bf16.msra.mxu0 0
  %160 = vmatprep.subr.bf16.mxu0 0
  %161 = vmatpush1.bf16.msra.mxu0 0
  %162 = vmatprep.subr.bf16.mxu0 0
  %163 = vmatpush1.bf16.msra.mxu0 0
  %164 = vmatprep.subr.bf16.mxu0 0
  %165 = vmatpush1.bf16.msra.mxu0 0
  %166 = vmatprep.mubr.bf16.mxu0 0
  %167 = vmatmul.mubr.bf16.gmra.mrb[0].mxu0 %v60
  %v168 = vpop.f32.mrb[0].mxu0
  %v169 = vadd.f32 0.0, %v168
  %v170 = vpop.f32.mrb[0].mxu0
  %v171 = vadd.f32 0.0, %v170
  %v172 = vpop.f32.mrb[0].mxu0
  %v173 = vadd.f32 0.0, %v172
  %v174 = vpop.f32.mrb[0].mxu0
  %v175 = vadd.f32 0.0, %v174
  %176 = vmatprep.mubr.bf16.mxu0 0
  %177 = vmatmul.mubr.bf16.gmra.mrb[0].mxu0 %v63
  %v178 = vpop.f32.mrb[0].mxu0
  %v179 = vadd.f32 0.0, %v178
  %v180 = vpop.f32.mrb[0].mxu0
  %v181 = vadd.f32 0.0, %v180
  %v182 = vpop.f32.mrb[0].mxu0
  %v183 = vadd.f32 0.0, %v182
  %v184 = vpop.f32.mrb[0].mxu0
  %v185 = vadd.f32 0.0, %v184
  %186 = vdwg.mxu0
  %v187 = vmax.f32 %v116, 0.0
  %v188 = vmax.f32 %v118, 0.0
  %v189 = vmax.f32 %v169, 0.0
  %v190 = vmax.f32 %v171, 0.0
  %v191 = vmax.f32 %v120, 0.0
  %v192 = vmax.f32 %v122, 0.0
  %v193 = vmax.f32 %v173, 0.0
  %v194 = vmax.f32 %v175, 0.0
  %v195 = vmax.f32 %v126, 0.0
  %v196 = vmax.f32 %v128, 0.0
  %v197 = vmax.f32 %v179, 0.0
  %v198 = vmax.f32 %v181, 0.0
  %v199 = vmax.f32 %v130, 0.0
  %v200 = vmax.f32 %v132, 0.0
  %v201 = vmax.f32 %v183, 0.0
  %v202 = vmax.f32 %v185, 0.0
  %v203 = vpack.c.bf16 %v191, %v187
  %v204 = vpack.c.bf16 %v192, %v188
  %v205 = vpack.c.bf16 %v193, %v189
  %v206 = vpack.c.bf16 %v194, %v190
  %v207 = vpack.c.bf16 %v199, %v195
  %v208 = vpack.c.bf16 %v200, %v196
  %v209 = vpack.c.bf16 %v201, %v197
  %v210 = vpack.c.bf16 %v202, %v198
  %vm211 = vcmask 261120
  %v213 = vsel %vm211, %v45, 0
  %215 = vmatprep.subr.bf16.mxu0 %v204
  %216 = vmatpush1.bf16.msra.mxu0 %v203
  %217 = vmatprep.subr.bf16.mxu0 %v208
  %218 = vmatpush1.bf16.msra.mxu0 %v207
  %219 = vmatprep.subr.bf16.mxu0 0
  %220 = vmatpush1.bf16.msra.mxu0 0
  %221 = vmatprep.subr.bf16.mxu0 0
  %222 = vmatpush1.bf16.msra.mxu0 0
  %223 = vmatprep.subr.bf16.mxu0 0
  %224 = vmatpush1.bf16.msra.mxu0 0
  %225 = vmatprep.subr.bf16.mxu0 0
  %226 = vmatpush1.bf16.msra.mxu0 0
  %227 = vmatprep.subr.bf16.mxu0 0
  %228 = vmatpush1.bf16.msra.mxu0 0
  %229 = vmatprep.subr.bf16.mxu0 0
  %230 = vmatpush1.bf16.msra.mxu0 0
  %231 = vmatprep.subr.bf16.mxu0 0
  %232 = vmatpush1.bf16.msra.mxu0 0
  %233 = vmatprep.subr.bf16.mxu0 0
  %234 = vmatpush1.bf16.msra.mxu0 0
  %235 = vmatprep.subr.bf16.mxu0 0
  %236 = vmatpush1.bf16.msra.mxu0 0
  %237 = vmatprep.subr.bf16.mxu0 0
  %238 = vmatpush1.bf16.msra.mxu0 0
  %239 = vmatprep.subr.bf16.mxu0 0
  %240 = vmatpush1.bf16.msra.mxu0 0
  %241 = vmatprep.subr.bf16.mxu0 0
  %242 = vmatpush1.bf16.msra.mxu0 0
  %243 = vmatprep.subr.bf16.mxu0 0
  %244 = vmatpush1.bf16.msra.mxu0 0
  %245 = vmatprep.subr.bf16.mxu0 0
  %246 = vmatpush1.bf16.msra.mxu0 0
  %247 = vmatprep.mubr.bf16.mxu0 0
  %248 = vmatmul.mubr.bf16.gmra.mrb[0].mxu0 %v213
  %v249 = vpop.f32.mrb[0].mxu0
  %v250 = vadd.f32 %v50, %v249
  %v251 = vpop.f32.mrb[0].mxu0
  %v252 = vadd.f32 %v50, %v251
  %v253 = vpop.f32.mrb[0].mxu0
  %v254 = vpop.f32.mrb[0].mxu0
  %255 = vdwg.mxu0
  %256 = vmatprep.subr.bf16.mxu0 %v206
  %257 = vmatpush1.bf16.msra.mxu0 %v205
  %258 = vmatprep.subr.bf16.mxu0 %v210
  %259 = vmatpush1.bf16.msra.mxu0 %v209
  %260 = vmatprep.subr.bf16.mxu0 0
  %261 = vmatpush1.bf16.msra.mxu0 0
  %262 = vmatprep.subr.bf16.mxu0 0
  %263 = vmatpush1.bf16.msra.mxu0 0
  %264 = vmatprep.subr.bf16.mxu0 0
  %265 = vmatpush1.bf16.msra.mxu0 0
  %266 = vmatprep.subr.bf16.mxu0 0
  %267 = vmatpush1.bf16.msra.mxu0 0
  %268 = vmatprep.subr.bf16.mxu0 0
  %269 = vmatpush1.bf16.msra.mxu0 0
  %270 = vmatprep.subr.bf16.mxu0 0
  %271 = vmatpush1.bf16.msra.mxu0 0
  %272 = vmatprep.subr.bf16.mxu0 0
  %273 = vmatpush1.bf16.msra.mxu0 0
  %274 = vmatprep.subr.bf16.mxu0 0
  %275 = vmatpush1.bf16.msra.mxu0 0
  %276 = vmatprep.subr.bf16.mxu0 0
  %277 = vmatpush1.bf16.msra.mxu0 0
  %278 = vmatprep.subr.bf16.mxu0 0
  %279 = vmatpush1.bf16.msra.mxu0 0
  %280 = vmatprep.subr.bf16.mxu0 0
  %281 = vmatpush1.bf16.msra.mxu0 0
  %282 = vmatprep.subr.bf16.mxu0 0
  %283 = vmatpush1.bf16.msra.mxu0 0
  %284 = vmatprep.subr.bf16.mxu0 0
  %285 = vmatpush1.bf16.msra.mxu0 0
  %286 = vmatprep.subr.bf16.mxu0 0
  %287 = vmatpush1.bf16.msra.mxu0 0
  %288 = vmatprep.mubr.bf16.mxu0 0
  %289 = vmatmul.mubr.bf16.gmra.mrb[0].mxu0 %v213
  %v290 = vpop.f32.mrb[0].mxu0
  %v291 = vadd.f32 %v50, %v290
  %v292 = vpop.f32.mrb[0].mxu0
  %v293 = vadd.f32 %v50, %v292
  %v294 = vpop.f32.mrb[0].mxu0
  %v295 = vpop.f32.mrb[0].mxu0
  %296 = vdwg.mxu0
  %v297 = vmul.f32 %v250, 0.3
  %v298 = vmul.f32 %v252, 0.3
  %v299 = vmul.f32 %v291, 0.3
  %v300 = vmul.f32 %v293, 0.3
  %v301 = vadd.f32 %v36, %v297
  %v302 = vadd.f32 %v37, %v298
  %v303 = vadd.f32 %v38, %v299
  %v304 = vadd.f32 %v39, %v300
  %v305 = vld [vmem:[%s1] sm:$0xf]
  %v306 = vsub.f32 1.0, %v305
  %v308 = vlaneseq
  %v309 = vshrl.u32 %v308, 7
  %v310 = vsub.s32 0, %v309
  %v311 = vrot.slane %v306, %v310
  %v312 = vlaneseq
  %v313 = vshrl.u32 %v312, 7
  %v314 = vsub.s32 1, %v313
  %v315 = vrot.slane %v306, %v314
  %v316 = vlaneseq
  %v317 = vshrl.u32 %v316, 7
  %v318 = vsub.s32 2, %v317
  %v319 = vrot.slane %v306, %v318
  %v320 = vlaneseq
  %v321 = vshrl.u32 %v320, 7
  %v322 = vsub.s32 3, %v321
  %v323 = vrot.slane %v306, %v322
  %v328 = vmul.f32 %v36, %v311
  %v329 = vmul.f32 %v37, %v315
  %v330 = vmul.f32 %v38, %v319
  %v331 = vmul.f32 %v39, %v323
  %v333 = vlaneseq
  %v334 = vshrl.u32 %v333, 7
  %v335 = vsub.s32 0, %v334
  %v336 = vrot.slane %v305, %v335
  %v337 = vlaneseq
  %v338 = vshrl.u32 %v337, 7
  %v339 = vsub.s32 1, %v338
  %v340 = vrot.slane %v305, %v339
  %v341 = vlaneseq
  %v342 = vshrl.u32 %v341, 7
  %v343 = vsub.s32 2, %v342
  %v344 = vrot.slane %v305, %v343
  %v345 = vlaneseq
  %v346 = vshrl.u32 %v345, 7
  %v347 = vsub.s32 3, %v346
  %v348 = vrot.slane %v305, %v347
  %v353 = vmul.f32 %v301, %v336
  %v354 = vmul.f32 %v302, %v340
  %v355 = vmul.f32 %v303, %v344
  %v356 = vmul.f32 %v304, %v348
  %v357 = vadd.f32 %v328, %v353
  %v358 = vadd.f32 %v329, %v354
  %v359 = vadd.f32 %v330, %v355
  %v360 = vadd.f32 %v331, %v356
  %s361 = scalar_lea.vmem %s2, 32
  %v362 = vld [vmem:[%s361] sm:$0xff]
  %v363 = vld [vmem:[%s361 + $0x8] sm:$0xff]
  %v364 = vld [vmem:[%s361 + $0x10] sm:$0xff]
  %v365 = vld [vmem:[%s361 + $0x18] sm:$0xff]
  %v366 = vpack.c.bf16 %v363, %v362
  %v367 = vpack.c.bf16 %v365, %v364
  %v369 = vsel %vm58, %v366, 0
  %v372 = vsel %vm58, %v367, 0
  %374 = vmatprep.subr.bf16.mxu0 %v73
  %375 = vmatpush1.bf16.msra.mxu0 %v70
  %376 = vmatprep.subr.bf16.mxu0 0
  %377 = vmatpush1.bf16.msra.mxu0 0
  %378 = vmatprep.subr.bf16.mxu0 0
  %379 = vmatpush1.bf16.msra.mxu0 0
  %380 = vmatprep.subr.bf16.mxu0 0
  %381 = vmatpush1.bf16.msra.mxu0 0
  %382 = vmatprep.subr.bf16.mxu0 0
  %383 = vmatpush1.bf16.msra.mxu0 0
  %384 = vmatprep.subr.bf16.mxu0 0
  %385 = vmatpush1.bf16.msra.mxu0 0
  %386 = vmatprep.subr.bf16.mxu0 0
  %387 = vmatpush1.bf16.msra.mxu0 0
  %388 = vmatprep.subr.bf16.mxu0 0
  %389 = vmatpush1.bf16.msra.mxu0 0
  %390 = vmatprep.subr.bf16.mxu0 0
  %391 = vmatpush1.bf16.msra.mxu0 0
  %392 = vmatprep.subr.bf16.mxu0 0
  %393 = vmatpush1.bf16.msra.mxu0 0
  %394 = vmatprep.subr.bf16.mxu0 0
  %395 = vmatpush1.bf16.msra.mxu0 0
  %396 = vmatprep.subr.bf16.mxu0 0
  %397 = vmatpush1.bf16.msra.mxu0 0
  %398 = vmatprep.subr.bf16.mxu0 0
  %399 = vmatpush1.bf16.msra.mxu0 0
  %400 = vmatprep.subr.bf16.mxu0 0
  %401 = vmatpush1.bf16.msra.mxu0 0
  %402 = vmatprep.subr.bf16.mxu0 0
  %403 = vmatpush1.bf16.msra.mxu0 0
  %404 = vmatprep.subr.bf16.mxu0 0
  %405 = vmatpush1.bf16.msra.mxu0 0
  %406 = vmatprep.mubr.bf16.mxu0 0
  %407 = vmatmul.mubr.bf16.gmra.mrb[0].mxu0 %v369
  %v408 = vpop.f32.mrb[0].mxu0
  %v409 = vadd.f32 0.0, %v408
  %v410 = vpop.f32.mrb[0].mxu0
  %v411 = vadd.f32 0.0, %v410
  %v412 = vpop.f32.mrb[0].mxu0
  %v413 = vadd.f32 0.0, %v412
  %v414 = vpop.f32.mrb[0].mxu0
  %v415 = vadd.f32 0.0, %v414
  %416 = vmatprep.mubr.bf16.mxu0 0
  %417 = vmatmul.mubr.bf16.gmra.mrb[0].mxu0 %v372
  %v418 = vpop.f32.mrb[0].mxu0
  %v419 = vadd.f32 0.0, %v418
  %v420 = vpop.f32.mrb[0].mxu0
  %v421 = vadd.f32 0.0, %v420
  %v422 = vpop.f32.mrb[0].mxu0
  %v423 = vadd.f32 0.0, %v422
  %v424 = vpop.f32.mrb[0].mxu0
  %v425 = vadd.f32 0.0, %v424
  %426 = vdwg.mxu0
  %427 = vmatprep.subr.bf16.mxu0 %v79
  %428 = vmatpush1.bf16.msra.mxu0 %v76
  %429 = vmatprep.subr.bf16.mxu0 0
  %430 = vmatpush1.bf16.msra.mxu0 0
  %431 = vmatprep.subr.bf16.mxu0 0
  %432 = vmatpush1.bf16.msra.mxu0 0
  %433 = vmatprep.subr.bf16.mxu0 0
  %434 = vmatpush1.bf16.msra.mxu0 0
  %435 = vmatprep.subr.bf16.mxu0 0
  %436 = vmatpush1.bf16.msra.mxu0 0
  %437 = vmatprep.subr.bf16.mxu0 0
  %438 = vmatpush1.bf16.msra.mxu0 0
  %439 = vmatprep.subr.bf16.mxu0 0
  %440 = vmatpush1.bf16.msra.mxu0 0
  %441 = vmatprep.subr.bf16.mxu0 0
  %442 = vmatpush1.bf16.msra.mxu0 0
  %443 = vmatprep.subr.bf16.mxu0 0
  %444 = vmatpush1.bf16.msra.mxu0 0
  %445 = vmatprep.subr.bf16.mxu0 0
  %446 = vmatpush1.bf16.msra.mxu0 0
  %447 = vmatprep.subr.bf16.mxu0 0
  %448 = vmatpush1.bf16.msra.mxu0 0
  %449 = vmatprep.subr.bf16.mxu0 0
  %450 = vmatpush1.bf16.msra.mxu0 0
  %451 = vmatprep.subr.bf16.mxu0 0
  %452 = vmatpush1.bf16.msra.mxu0 0
  %453 = vmatprep.subr.bf16.mxu0 0
  %454 = vmatpush1.bf16.msra.mxu0 0
  %455 = vmatprep.subr.bf16.mxu0 0
  %456 = vmatpush1.bf16.msra.mxu0 0
  %457 = vmatprep.subr.bf16.mxu0 0
  %458 = vmatpush1.bf16.msra.mxu0 0
  %459 = vmatprep.mubr.bf16.mxu0 0
  %460 = vmatmul.mubr.bf16.gmra.mrb[0].mxu0 %v369
  %v461 = vpop.f32.mrb[0].mxu0
  %v462 = vadd.f32 0.0, %v461
  %v463 = vpop.f32.mrb[0].mxu0
  %v464 = vadd.f32 0.0, %v463
  %v465 = vpop.f32.mrb[0].mxu0
  %v466 = vadd.f32 0.0, %v465
  %v467 = vpop.f32.mrb[0].mxu0
  %v468 = vadd.f32 0.0, %v467
  %469 = vmatprep.mubr.bf16.mxu0 0
  %470 = vmatmul.mubr.bf16.gmra.mrb[0].mxu0 %v372
  %v471 = vpop.f32.mrb[0].mxu0
  %v472 = vadd.f32 0.0, %v471
  %v473 = vpop.f32.mrb[0].mxu0
  %v474 = vadd.f32 0.0, %v473
  %v475 = vpop.f32.mrb[0].mxu0
  %v476 = vadd.f32 0.0, %v475
  %v477 = vpop.f32.mrb[0].mxu0
  %v478 = vadd.f32 0.0, %v477
  %479 = vdwg.mxu0
  %v480 = vmax.f32 %v409, 0.0
  %v481 = vmax.f32 %v411, 0.0
  %v482 = vmax.f32 %v462, 0.0
  %v483 = vmax.f32 %v464, 0.0
  %v484 = vmax.f32 %v413, 0.0
  %v485 = vmax.f32 %v415, 0.0
  %v486 = vmax.f32 %v466, 0.0
  %v487 = vmax.f32 %v468, 0.0
  %v488 = vmax.f32 %v419, 0.0
  %v489 = vmax.f32 %v421, 0.0
  %v490 = vmax.f32 %v472, 0.0
  %v491 = vmax.f32 %v474, 0.0
  %v492 = vmax.f32 %v423, 0.0
  %v493 = vmax.f32 %v425, 0.0
  %v494 = vmax.f32 %v476, 0.0
  %v495 = vmax.f32 %v478, 0.0
  %v496 = vpack.c.bf16 %v484, %v480
  %v497 = vpack.c.bf16 %v485, %v481
  %v498 = vpack.c.bf16 %v486, %v482
  %v499 = vpack.c.bf16 %v487, %v483
  %v500 = vpack.c.bf16 %v492, %v488
  %v501 = vpack.c.bf16 %v493, %v489
  %v502 = vpack.c.bf16 %v494, %v490
  %v503 = vpack.c.bf16 %v495, %v491
  %504 = vmatprep.subr.bf16.mxu0 %v497
  %505 = vmatpush1.bf16.msra.mxu0 %v496
  %506 = vmatprep.subr.bf16.mxu0 %v501
  %507 = vmatpush1.bf16.msra.mxu0 %v500
  %508 = vmatprep.subr.bf16.mxu0 0
  %509 = vmatpush1.bf16.msra.mxu0 0
  %510 = vmatprep.subr.bf16.mxu0 0
  %511 = vmatpush1.bf16.msra.mxu0 0
  %512 = vmatprep.subr.bf16.mxu0 0
  %513 = vmatpush1.bf16.msra.mxu0 0
  %514 = vmatprep.subr.bf16.mxu0 0
  %515 = vmatpush1.bf16.msra.mxu0 0
  %516 = vmatprep.subr.bf16.mxu0 0
  %517 = vmatpush1.bf16.msra.mxu0 0
  %518 = vmatprep.subr.bf16.mxu0 0
  %519 = vmatpush1.bf16.msra.mxu0 0
  %520 = vmatprep.subr.bf16.mxu0 0
  %521 = vmatpush1.bf16.msra.mxu0 0
  %522 = vmatprep.subr.bf16.mxu0 0
  %523 = vmatpush1.bf16.msra.mxu0 0
  %524 = vmatprep.subr.bf16.mxu0 0
  %525 = vmatpush1.bf16.msra.mxu0 0
  %526 = vmatprep.subr.bf16.mxu0 0
  %527 = vmatpush1.bf16.msra.mxu0 0
  %528 = vmatprep.subr.bf16.mxu0 0
  %529 = vmatpush1.bf16.msra.mxu0 0
  %530 = vmatprep.subr.bf16.mxu0 0
  %531 = vmatpush1.bf16.msra.mxu0 0
  %532 = vmatprep.subr.bf16.mxu0 0
  %533 = vmatpush1.bf16.msra.mxu0 0
  %534 = vmatprep.subr.bf16.mxu0 0
  %535 = vmatpush1.bf16.msra.mxu0 0
  %536 = vmatprep.mubr.bf16.mxu0 0
  %537 = vmatmul.mubr.bf16.gmra.mrb[0].mxu0 %v213
  %v538 = vpop.f32.mrb[0].mxu0
  %v539 = vadd.f32 %v50, %v538
  %v540 = vpop.f32.mrb[0].mxu0
  %v541 = vadd.f32 %v50, %v540
  %v542 = vpop.f32.mrb[0].mxu0
  %v543 = vpop.f32.mrb[0].mxu0
  %544 = vdwg.mxu0
  %545 = vmatprep.subr.bf16.mxu0 %v499
  %546 = vmatpush1.bf16.msra.mxu0 %v498
  %547 = vmatprep.subr.bf16.mxu0 %v503
  %548 = vmatpush1.bf16.msra.mxu0 %v502
  %549 = vmatprep.subr.bf16.mxu0 0
  %550 = vmatpush1.bf16.msra.mxu0 0
  %551 = vmatprep.subr.bf16.mxu0 0
  %552 = vmatpush1.bf16.msra.mxu0 0
  %553 = vmatprep.subr.bf16.mxu0 0
  %554 = vmatpush1.bf16.msra.mxu0 0
  %555 = vmatprep.subr.bf16.mxu0 0
  %556 = vmatpush1.bf16.msra.mxu0 0
  %557 = vmatprep.subr.bf16.mxu0 0
  %558 = vmatpush1.bf16.msra.mxu0 0
  %559 = vmatprep.subr.bf16.mxu0 0
  %560 = vmatpush1.bf16.msra.mxu0 0
  %561 = vmatprep.subr.bf16.mxu0 0
  %562 = vmatpush1.bf16.msra.mxu0 0
  %563 = vmatprep.subr.bf16.mxu0 0
  %564 = vmatpush1.bf16.msra.mxu0 0
  %565 = vmatprep.subr.bf16.mxu0 0
  %566 = vmatpush1.bf16.msra.mxu0 0
  %567 = vmatprep.subr.bf16.mxu0 0
  %568 = vmatpush1.bf16.msra.mxu0 0
  %569 = vmatprep.subr.bf16.mxu0 0
  %570 = vmatpush1.bf16.msra.mxu0 0
  %571 = vmatprep.subr.bf16.mxu0 0
  %572 = vmatpush1.bf16.msra.mxu0 0
  %573 = vmatprep.subr.bf16.mxu0 0
  %574 = vmatpush1.bf16.msra.mxu0 0
  %575 = vmatprep.subr.bf16.mxu0 0
  %576 = vmatpush1.bf16.msra.mxu0 0
  %577 = vmatprep.mubr.bf16.mxu0 0
  %578 = vmatmul.mubr.bf16.gmra.mrb[0].mxu0 %v213
  %v579 = vpop.f32.mrb[0].mxu0
  %v580 = vadd.f32 %v50, %v579
  %v581 = vpop.f32.mrb[0].mxu0
  %v582 = vadd.f32 %v50, %v581
  %v583 = vpop.f32.mrb[0].mxu0
  %v584 = vpop.f32.mrb[0].mxu0
  %585 = vdwg.mxu0
  %v586 = vmul.f32 %v539, 0.3
  %v587 = vmul.f32 %v541, 0.3
  %v588 = vmul.f32 %v580, 0.3
  %v589 = vmul.f32 %v582, 0.3
  %v590 = vadd.f32 %v36, %v586
  %v591 = vadd.f32 %v37, %v587
  %v592 = vadd.f32 %v38, %v588
  %v593 = vadd.f32 %v39, %v589
  %s594 = scalar_lea.vmem %s1, 4
  %v595 = vld [vmem:[%s594] sm:$0xf]
  %v596 = vsub.f32 1.0, %v595
  %v598 = vlaneseq
  %v599 = vshrl.u32 %v598, 7
  %v600 = vsub.s32 0, %v599
  %v601 = vrot.slane %v596, %v600
  %v602 = vlaneseq
  %v603 = vshrl.u32 %v602, 7
  %v604 = vsub.s32 1, %v603
  %v605 = vrot.slane %v596, %v604
  %v606 = vlaneseq
  %v607 = vshrl.u32 %v606, 7
  %v608 = vsub.s32 2, %v607
  %v609 = vrot.slane %v596, %v608
  %v610 = vlaneseq
  %v611 = vshrl.u32 %v610, 7
  %v612 = vsub.s32 3, %v611
  %v613 = vrot.slane %v596, %v612
  %v618 = vmul.f32 %v357, %v601
  %v619 = vmul.f32 %v358, %v605
  %v620 = vmul.f32 %v359, %v609
  %v621 = vmul.f32 %v360, %v613
  %v623 = vlaneseq
  %v624 = vshrl.u32 %v623, 7
  %v625 = vsub.s32 0, %v624
  %v626 = vrot.slane %v595, %v625
  %v627 = vlaneseq
  %v628 = vshrl.u32 %v627, 7
  %v629 = vsub.s32 1, %v628
  %v630 = vrot.slane %v595, %v629
  %v631 = vlaneseq
  %v632 = vshrl.u32 %v631, 7
  %v633 = vsub.s32 2, %v632
  %v634 = vrot.slane %v595, %v633
  %v635 = vlaneseq
  %v636 = vshrl.u32 %v635, 7
  %v637 = vsub.s32 3, %v636
  %v638 = vrot.slane %v595, %v637
  %v643 = vmul.f32 %v590, %v626
  %v644 = vmul.f32 %v591, %v630
  %v645 = vmul.f32 %v592, %v634
  %v646 = vmul.f32 %v593, %v638
  %v647 = vadd.f32 %v618, %v643
  %v648 = vadd.f32 %v619, %v644
  %v649 = vadd.f32 %v620, %v645
  %v650 = vadd.f32 %v621, %v646
  %v655 = vcombine.low %v590, %v591
  %v656 = vcombine.low %v592, %v593
  %659 = vst [vmem:[%s9] sm:$0x77] %v655
  %660 = vst [vmem:[%s9 + $0x8] sm:$0x77] %v656
  %v665 = vcombine.low %v647, %v648
  %v666 = vcombine.low %v649, %v650
  %669 = vst [vmem:[%s10] sm:$0x77] %v665
  %670 = vst [vmem:[%s10 + $0x8] sm:$0x77] %v666
  %v671 = vld [vmem:[%s6] sm:$0xff]
  %v672 = vld [vmem:[%s6 + $0x8] sm:$0xff]
  %v673 = vld [vmem:[%s6 + $0x10] sm:$0xff]
  %v674 = vld [vmem:[%s6 + $0x18] sm:$0xff]
  %676 = vset.pattern.permute.xlu0 0
  %677 = vperm.xlu0 %676, %v671
  %v678 = vpop.permute.xlu0 %677
  %681 = vset.pattern.permute.xlu0 0
  %682 = vperm.xlu0 %681, %v672
  %v683 = vpop.permute.xlu0 %682
  %686 = vset.pattern.permute.xlu0 0
  %687 = vperm.xlu0 %686, %v673
  %v688 = vpop.permute.xlu0 %687
  %691 = vset.pattern.permute.xlu0 0
  %692 = vperm.xlu0 %691, %v674
  %v693 = vpop.permute.xlu0 %692
  %v695 = vld [vmem:[%s8] sm:$0xff]
  %v696 = vld [vmem:[%s8 + $0x8] sm:$0x1]
  %698 = vset.pattern.permute.xlu0 0
  %699 = vperm.xlu0 %698, %v695
  %v700 = vpop.permute.xlu0 %699
  %703 = vset.pattern.permute.xlu0 0
  %704 = vperm.xlu0 %703, %v696
  %v705 = vpop.permute.xlu0 %704
  %v707 = vld [vmem:[%s5] sm:$0xff]
  %v708 = vld [vmem:[%s5 + $0x8] sm:$0xff]
  %v709 = vld [vmem:[%s5 + $0x10] sm:$0xff]
  %v710 = vld [vmem:[%s5 + $0x18] sm:$0xff]
  %v711 = vpack.c.bf16 %v708, %v707
  %v712 = vpack.c.bf16 %v710, %v709
  %v713 = vpack.c.bf16 %v647, %v647
  %v714 = vpack.c.bf16 %v648, %v648
  %v715 = vpack.c.bf16 %v649, %v649
  %v716 = vpack.c.bf16 %v650, %v650
  %vm717 = vcmask 23552
  %v719 = vsel %vm717, %v711, 0
  %v722 = vsel %vm717, %v712, 0
  %vm724 = vcmask 1040384
  %v725 = vsel %vm724, 4294967295, 65535
  %v726 = vsel %vm65, %v725, 0
  %v728 = vand.u32 %v713, %v726
  %v731 = vand.u32 %v714, %v726
  %v734 = vand.u32 %v715, %v726
  %v737 = vand.u32 %v716, %v726
  %739 = vmatprep.subr.bf16.mxu0 %v731
  %740 = vmatpush1.bf16.msra.mxu0 %v728
  %741 = vmatprep.subr.bf16.mxu0 0
  %742 = vmatpush1.bf16.msra.mxu0 0
  %743 = vmatprep.subr.bf16.mxu0 0
  %744 = vmatpush1.bf16.msra.mxu0 0
  %745 = vmatprep.subr.bf16.mxu0 0
  %746 = vmatpush1.bf16.msra.mxu0 0
  %747 = vmatprep.subr.bf16.mxu0 0
  %748 = vmatpush1.bf16.msra.mxu0 0
  %749 = vmatprep.subr.bf16.mxu0 0
  %750 = vmatpush1.bf16.msra.mxu0 0
  %751 = vmatprep.subr.bf16.mxu0 0
  %752 = vmatpush1.bf16.msra.mxu0 0
  %753 = vmatprep.subr.bf16.mxu0 0
  %754 = vmatpush1.bf16.msra.mxu0 0
  %755 = vmatprep.subr.bf16.mxu0 0
  %756 = vmatpush1.bf16.msra.mxu0 0
  %757 = vmatprep.subr.bf16.mxu0 0
  %758 = vmatpush1.bf16.msra.mxu0 0
  %759 = vmatprep.subr.bf16.mxu0 0
  %760 = vmatpush1.bf16.msra.mxu0 0
  %761 = vmatprep.subr.bf16.mxu0 0
  %762 = vmatpush1.bf16.msra.mxu0 0
  %763 = vmatprep.subr.bf16.mxu0 0
  %764 = vmatpush1.bf16.msra.mxu0 0
  %765 = vmatprep.subr.bf16.mxu0 0
  %766 = vmatpush1.bf16.msra.mxu0 0
  %767 = vmatprep.subr.bf16.mxu0 0
  %768 = vmatpush1.bf16.msra.mxu0 0
  %769 = vmatprep.subr.bf16.mxu0 0
  %770 = vmatpush1.bf16.msra.mxu0 0
  %771 = vmatprep.mubr.bf16.mxu0 0
  %772 = vmatmul.mubr.bf16.gmra.mrb[0].mxu0 %v719
  %v773 = vpop.f32.mrb[0].mxu0
  %v774 = vadd.f32 %v678, %v773
  %v775 = vpop.f32.mrb[0].mxu0
  %v776 = vadd.f32 %v678, %v775
  %v777 = vpop.f32.mrb[0].mxu0
  %v778 = vadd.f32 %v683, %v777
  %v779 = vpop.f32.mrb[0].mxu0
  %v780 = vadd.f32 %v683, %v779
  %781 = vmatprep.mubr.bf16.mxu0 0
  %782 = vmatmul.mubr.bf16.gmra.mrb[0].mxu0 %v722
  %v783 = vpop.f32.mrb[0].mxu0
  %v784 = vadd.f32 %v688, %v783
  %v785 = vpop.f32.mrb[0].mxu0
  %v786 = vadd.f32 %v688, %v785
  %v787 = vpop.f32.mrb[0].mxu0
  %v788 = vadd.f32 %v693, %v787
  %v789 = vpop.f32.mrb[0].mxu0
  %v790 = vadd.f32 %v693, %v789
  %791 = vdwg.mxu0
  %792 = vmatprep.subr.bf16.mxu0 %v737
  %793 = vmatpush1.bf16.msra.mxu0 %v734
  %794 = vmatprep.subr.bf16.mxu0 0
  %795 = vmatpush1.bf16.msra.mxu0 0
  %796 = vmatprep.subr.bf16.mxu0 0
  %797 = vmatpush1.bf16.msra.mxu0 0
  %798 = vmatprep.subr.bf16.mxu0 0
  %799 = vmatpush1.bf16.msra.mxu0 0
  %800 = vmatprep.subr.bf16.mxu0 0
  %801 = vmatpush1.bf16.msra.mxu0 0
  %802 = vmatprep.subr.bf16.mxu0 0
  %803 = vmatpush1.bf16.msra.mxu0 0
  %804 = vmatprep.subr.bf16.mxu0 0
  %805 = vmatpush1.bf16.msra.mxu0 0
  %806 = vmatprep.subr.bf16.mxu0 0
  %807 = vmatpush1.bf16.msra.mxu0 0
  %808 = vmatprep.subr.bf16.mxu0 0
  %809 = vmatpush1.bf16.msra.mxu0 0
  %810 = vmatprep.subr.bf16.mxu0 0
  %811 = vmatpush1.bf16.msra.mxu0 0
  %812 = vmatprep.subr.bf16.mxu0 0
  %813 = vmatpush1.bf16.msra.mxu0 0
  %814 = vmatprep.subr.bf16.mxu0 0
  %815 = vmatpush1.bf16.msra.mxu0 0
  %816 = vmatprep.subr.bf16.mxu0 0
  %817 = vmatpush1.bf16.msra.mxu0 0
  %818 = vmatprep.subr.bf16.mxu0 0
  %819 = vmatpush1.bf16.msra.mxu0 0
  %820 = vmatprep.subr.bf16.mxu0 0
  %821 = vmatpush1.bf16.msra.mxu0 0
  %822 = vmatprep.subr.bf16.mxu0 0
  %823 = vmatpush1.bf16.msra.mxu0 0
  %824 = vmatprep.mubr.bf16.mxu0 0
  %825 = vmatmul.mubr.bf16.gmra.mrb[0].mxu0 %v719
  %v826 = vpop.f32.mrb[0].mxu0
  %v827 = vadd.f32 %v678, %v826
  %v828 = vpop.f32.mrb[0].mxu0
  %v829 = vadd.f32 %v678, %v828
  %v830 = vpop.f32.mrb[0].mxu0
  %v831 = vadd.f32 %v683, %v830
  %v832 = vpop.f32.mrb[0].mxu0
  %v833 = vadd.f32 %v683, %v832
  %834 = vmatprep.mubr.bf16.mxu0 0
  %835 = vmatmul.mubr.bf16.gmra.mrb[0].mxu0 %v722
  %v836 = vpop.f32.mrb[0].mxu0
  %v837 = vadd.f32 %v688, %v836
  %v838 = vpop.f32.mrb[0].mxu0
  %v839 = vadd.f32 %v688, %v838
  %v840 = vpop.f32.mrb[0].mxu0
  %v841 = vadd.f32 %v693, %v840
  %v842 = vpop.f32.mrb[0].mxu0
  %v843 = vadd.f32 %v693, %v842
  %844 = vdwg.mxu0
  %v845 = vmax.f32 %v774, 0.0
  %v846 = vmax.f32 %v776, 0.0
  %v847 = vmax.f32 %v827, 0.0
  %v848 = vmax.f32 %v829, 0.0
  %v849 = vmax.f32 %v778, 0.0
  %v850 = vmax.f32 %v780, 0.0
  %v851 = vmax.f32 %v831, 0.0
  %v852 = vmax.f32 %v833, 0.0
  %v853 = vmax.f32 %v784, 0.0
  %v854 = vmax.f32 %v786, 0.0
  %v855 = vmax.f32 %v837, 0.0
  %v856 = vmax.f32 %v839, 0.0
  %v857 = vmax.f32 %v788, 0.0
  %v858 = vmax.f32 %v790, 0.0
  %v859 = vmax.f32 %v841, 0.0
  %v860 = vmax.f32 %v843, 0.0
  %v861 = vld [vmem:[%s7] sm:$0xff]
  %v862 = vld [vmem:[%s7 + $0x8] sm:$0x1]
  %v863 = vpack.c.bf16 %v862, %v861
  %v864 = vpack.c.bf16 %v849, %v845
  %v865 = vpack.c.bf16 %v850, %v846
  %v866 = vpack.c.bf16 %v851, %v847
  %v867 = vpack.c.bf16 %v852, %v848
  %v868 = vpack.c.bf16 %v857, %v853
  %v869 = vpack.c.bf16 %v858, %v854
  %v870 = vpack.c.bf16 %v859, %v855
  %v871 = vpack.c.bf16 %v860, %v856
  %v873 = vsel %vm211, %v863, 0
  %875 = vmatprep.subr.bf16.mxu0 %v865
  %876 = vmatpush1.bf16.msra.mxu0 %v864
  %877 = vmatprep.subr.bf16.mxu0 %v869
  %878 = vmatpush1.bf16.msra.mxu0 %v868
  %879 = vmatprep.subr.bf16.mxu0 0
  %880 = vmatpush1.bf16.msra.mxu0 0
  %881 = vmatprep.subr.bf16.mxu0 0
  %882 = vmatpush1.bf16.msra.mxu0 0
  %883 = vmatprep.subr.bf16.mxu0 0
  %884 = vmatpush1.bf16.msra.mxu0 0
  %885 = vmatprep.subr.bf16.mxu0 0
  %886 = vmatpush1.bf16.msra.mxu0 0
  %887 = vmatprep.subr.bf16.mxu0 0
  %888 = vmatpush1.bf16.msra.mxu0 0
  %889 = vmatprep.subr.bf16.mxu0 0
  %890 = vmatpush1.bf16.msra.mxu0 0
  %891 = vmatprep.subr.bf16.mxu0 0
  %892 = vmatpush1.bf16.msra.mxu0 0
  %893 = vmatprep.subr.bf16.mxu0 0
  %894 = vmatpush1.bf16.msra.mxu0 0
  %895 = vmatprep.subr.bf16.mxu0 0
  %896 = vmatpush1.bf16.msra.mxu0 0
  %897 = vmatprep.subr.bf16.mxu0 0
  %898 = vmatpush1.bf16.msra.mxu0 0
  %899 = vmatprep.subr.bf16.mxu0 0
  %900 = vmatpush1.bf16.msra.mxu0 0
  %901 = vmatprep.subr.bf16.mxu0 0
  %902 = vmatpush1.bf16.msra.mxu0 0
  %903 = vmatprep.subr.bf16.mxu0 0
  %904 = vmatpush1.bf16.msra.mxu0 0
  %905 = vmatprep.subr.bf16.mxu0 0
  %906 = vmatpush1.bf16.msra.mxu0 0
  %907 = vmatprep.mubr.bf16.mxu0 0
  %908 = vmatmul.mubr.bf16.gmra.mrb[0].mxu0 %v873
  %v909 = vpop.f32.mrb[0].mxu0
  %v910 = vadd.f32 %v700, %v909
  %v911 = vpop.f32.mrb[0].mxu0
  %v912 = vadd.f32 %v700, %v911
  %v913 = vpop.f32.mrb[0].mxu0
  %v914 = vadd.f32 %v705, %v913
  %v915 = vpop.f32.mrb[0].mxu0
  %v916 = vadd.f32 %v705, %v915
  %917 = vdwg.mxu0
  %918 = vmatprep.subr.bf16.mxu0 %v867
  %919 = vmatpush1.bf16.msra.mxu0 %v866
  %920 = vmatprep.subr.bf16.mxu0 %v871
  %921 = vmatpush1.bf16.msra.mxu0 %v870
  %922 = vmatprep.subr.bf16.mxu0 0
  %923 = vmatpush1.bf16.msra.mxu0 0
  %924 = vmatprep.subr.bf16.mxu0 0
  %925 = vmatpush1.bf16.msra.mxu0 0
  %926 = vmatprep.subr.bf16.mxu0 0
  %927 = vmatpush1.bf16.msra.mxu0 0
  %928 = vmatprep.subr.bf16.mxu0 0
  %929 = vmatpush1.bf16.msra.mxu0 0
  %930 = vmatprep.subr.bf16.mxu0 0
  %931 = vmatpush1.bf16.msra.mxu0 0
  %932 = vmatprep.subr.bf16.mxu0 0
  %933 = vmatpush1.bf16.msra.mxu0 0
  %934 = vmatprep.subr.bf16.mxu0 0
  %935 = vmatpush1.bf16.msra.mxu0 0
  %936 = vmatprep.subr.bf16.mxu0 0
  %937 = vmatpush1.bf16.msra.mxu0 0
  %938 = vmatprep.subr.bf16.mxu0 0
  %939 = vmatpush1.bf16.msra.mxu0 0
  %940 = vmatprep.subr.bf16.mxu0 0
  %941 = vmatpush1.bf16.msra.mxu0 0
  %942 = vmatprep.subr.bf16.mxu0 0
  %943 = vmatpush1.bf16.msra.mxu0 0
  %944 = vmatprep.subr.bf16.mxu0 0
  %945 = vmatpush1.bf16.msra.mxu0 0
  %946 = vmatprep.subr.bf16.mxu0 0
  %947 = vmatpush1.bf16.msra.mxu0 0
  %948 = vmatprep.subr.bf16.mxu0 0
  %949 = vmatpush1.bf16.msra.mxu0 0
  %950 = vmatprep.mubr.bf16.mxu0 0
  %951 = vmatmul.mubr.bf16.gmra.mrb[0].mxu0 %v873
  %v952 = vpop.f32.mrb[0].mxu0
  %v953 = vadd.f32 %v700, %v952
  %v954 = vpop.f32.mrb[0].mxu0
  %v955 = vadd.f32 %v700, %v954
  %v956 = vpop.f32.mrb[0].mxu0
  %v957 = vadd.f32 %v705, %v956
  %v958 = vpop.f32.mrb[0].mxu0
  %v959 = vadd.f32 %v705, %v958
  %960 = vdwg.mxu0
  %961 = vst [vmem:[%s11] sm:$0xff] %v910
  %962 = vst [vmem:[%s11 + $0x8] sm:$0xff] %v912
  %963 = vst [vmem:[%s11 + $0x10] sm:$0xff] %v953
  %964 = vst [vmem:[%s11 + $0x18] sm:$0xff] %v955
  %965 = vst [vmem:[%s11 + $0x20] sm:$0x1] %v914
  %966 = vst [vmem:[%s11 + $0x28] sm:$0x1] %v916
  %967 = vst [vmem:[%s11 + $0x30] sm:$0x1] %v957
  %968 = vst [vmem:[%s11 + $0x38] sm:$0x1] %v959
  // Predicated region
  $region38: #{_wam_forward_arrays.1} parent=0 // pred_check
    _
  $region39: #{_wam_forward_arrays.1} parent=0 // pred_check_branch
    %970 = sbr.rel (0) target = $region41
  $region40: #{_wam_forward_arrays.1} parent=0 // pred_region
    _
  $region41: #{_wam_forward_arrays.1} parent=0 // pred_fallthru
    _
  // Predicated region
  $region42: #{_wam_forward_arrays.1} parent=0 // pred_check
    _
  $region43: #{_wam_forward_arrays.1} parent=0 // pred_check_branch
    %972 = sbr.rel (0) target = $region45
  $region44: #{_wam_forward_arrays.1} parent=0 // pred_region
    _
  $region45: #{_wam_forward_arrays.1} parent=0 // pred_fallthru
    _
  // Predicated region
  $region46: #{_wam_forward_arrays.1} parent=0 // pred_check
    _
  $region47: #{_wam_forward_arrays.1} parent=0 // pred_check_branch
    %974 = sbr.rel (0) target = $region49
  $region48: #{_wam_forward_arrays.1} parent=0 // pred_region
    _
  $region49: #{_wam_forward_arrays.1} parent=0 // pred_fallthru
    _
  // Predicated region
  $region50: #{_wam_forward_arrays.1} parent=0 // pred_check
    _
  $region51: #{_wam_forward_arrays.1} parent=0 // pred_check_branch
    %976 = sbr.rel (0) target = $region53
  $region52: #{_wam_forward_arrays.1} parent=0 // pred_region
    _
  $region53: #{_wam_forward_arrays.1} parent=0 // pred_fallthru
    _
  // Predicated region
  $region54: #{_wam_forward_arrays.1} parent=0 // pred_check
    _
  $region55: #{_wam_forward_arrays.1} parent=0 // pred_check_branch
    %978 = sbr.rel (0) target = $region57
  $region56: #{_wam_forward_arrays.1} parent=0 // pred_region
    _
  $region57: #{_wam_forward_arrays.1} parent=0 // pred_fallthru
    _
  // Predicated region
  $region58: #{_wam_forward_arrays.1} parent=0 // pred_check
    _
  $region59: #{_wam_forward_arrays.1} parent=0 // pred_check_branch
    %980 = sbr.rel (0) target = $region61
  $region60: #{_wam_forward_arrays.1} parent=0 // pred_region
    _
  $region61: #{_wam_forward_arrays.1} parent=0 // pred_fallthru
    _

</llo_original>
